<compile_context>
chip_gen: v7x
topology: tpu7x:2x2x1
jax: 0.10.0
libtpu: 0.0.40
codegen_flags: <defaults>
</compile_context>

<pallas_src>
import math

import jax
import jax.numpy as jnp
from jax import lax
from jax.experimental import pallas as pl
from jax.experimental.pallas import tpu as pltpu

LANES = 128
# Target for the double-buffered input footprint (2 operands x 2 buffers).
_IN_VMEM_BUDGET = 24 << 20


def _round_up(v, m):
    return -(-v // m) * m


def _write_partials(out_ref, s_mse, s_lc, s_hc):
    """Place the 3 scalars on sublane rows 0/1/2 of a dense (8,128) tile so the
    output store is a lane-dense unmasked vst."""
    row = lax.broadcasted_iota(jnp.int32, (8, LANES), 0)
    vals = (jnp.where(row == 0, s_mse, 0.0)
            + jnp.where(row == 1, s_lc, 0.0)
            + jnp.where(row == 2, s_hc, 0.0))
    out_ref[...] = vals[None].astype(jnp.float32)


def _make_kernel_3d(r, tb, nb, need_mask):
    """Lane-dense path: block (r, tb, 128) of the (r, nb, 128) view."""

    def kernel(x_ref, t_ref, out_ref):
        if need_mask:
            rowi = lax.broadcasted_iota(jnp.int32, (tb, LANES), 0)
            valid = (pl.program_id(0) * tb + rowi) < nb
            msum = lambda v: jnp.sum(jnp.where(valid, v, 0.0))
        else:
            msum = jnp.sum

        # Per-row reads; x0 is reused for the MSE sum and both hinge terms.
        x0 = x_ref[0].astype(jnp.float32)   # (tb, 128)
        x1 = x_ref[1].astype(jnp.float32)
        x2 = x_ref[2].astype(jnp.float32)

        s_x = msum(x0) + msum(x1) + msum(x2)
        for j in range(3, r):               # r is small & static (usually 3)
            s_x = s_x + msum(x_ref[j].astype(jnp.float32))

        s_t = msum(t_ref[0].astype(jnp.float32))
        for j in range(1, r):
            s_t = s_t + msum(t_ref[j].astype(jnp.float32))

        s_lc = msum(jnp.minimum(x0 - x1, 0.0))
        s_hc = msum(jnp.minimum(x2 - x0, 0.0))
        _write_partials(out_ref, s_t - s_x, s_lc, s_hc)

    return kernel


def _make_kernel_2d(r, cols, n):
    """Ragged fallback (n % 128 != 0): block (r, cols) of the (r, n) view,
    tail columns masked in-kernel (no wrapper pad)."""

    def kernel(x_ref, t_ref, out_ref):
        col = lax.broadcasted_iota(jnp.int32, (1, cols), 1)
        valid = (pl.program_id(0) * cols + col) < n          # (1, cols)

        x = x_ref[...].astype(jnp.float32)                   # (r, cols)
        t = t_ref[...].astype(jnp.float32)

        s_x = jnp.sum(jnp.where(valid, x, 0.0))
        s_t = jnp.sum(jnp.where(valid, t, 0.0))
        d_lc = jnp.minimum(x[0:1, :] - x[1:2, :], 0.0)
        d_hc = jnp.minimum(x[2:3, :] - x[0:1, :], 0.0)
        s_lc = jnp.sum(jnp.where(valid, d_lc, 0.0))
        s_hc = jnp.sum(jnp.where(valid, d_hc, 0.0))
        _write_partials(out_ref, s_t - s_x, s_lc, s_hc)

    return kernel


def chl_loss(inputs, targets):
    """CHLLoss forward.  inputs/targets: same shape, first dim >= 3."""
    assert inputs.shape == targets.shape
    r = inputs.shape[0]
    assert r >= 3, "CHLLoss needs at least 3 rows along dim 0"
    n = math.prod(inputs.shape[1:])
    itemsize = jnp.dtype(inputs.dtype).itemsize
    packing = max(8, 32 // max(1, itemsize))   # 8 f32, 16 bf16, 32 int8/fp8

    x2 = inputs.reshape(r, n)                  # free (contiguous) reshape
    t2 = targets.reshape(r, n)

    if n % LANES == 0:
        # --- main lane-dense path -------------------------------------------
        nb = n // LANES
        tb = _IN_VMEM_BUDGET // (4 * r * LANES * itemsize)
        tb = max(packing, (tb // packing) * packing)
        if tb >= nb:
            if nb >= 2 * packing:
                # Split so the "parallel" grid axis has >=2 steps (both v7x TCs).
                tb = _round_up(-(-nb // 2), packing)
            else:
                tb = nb                        # full-extent block (always legal)
        num_tiles = -(-nb // tb)
        need_mask = (nb % tb) != 0             # tail tile masked in-kernel

        x_in = x2.reshape(r, nb, LANES)        # free reshape (n == nb*128)
        t_in = t2.reshape(r, nb, LANES)
        kernel = _make_kernel_3d(r, tb, nb, need_mask)
        in_specs = [pl.BlockSpec((r, tb, LANES), lambda i: (0, i, 0)),
                    pl.BlockSpec((r, tb, LANES), lambda i: (0, i, 0))]
        block_in_bytes = r * tb * LANES * itemsize
    else:
        # --- ragged fallback (n not a multiple of 128) ------------------------
        if n < LANES:
            cols = n                           # full-extent block
        else:
            cols = _IN_VMEM_BUDGET // (4 * _round_up(r, 8) * itemsize)
            cols = max(LANES, (cols // LANES) * LANES)
            cols = min(cols, (n // LANES) * LANES)
        num_tiles = -(-n // cols)

        x_in, t_in = x2, t2
        kernel = _make_kernel_2d(r, cols, n)
        in_specs = [pl.BlockSpec((r, cols), lambda i: (0, i)),
                    pl.BlockSpec((r, cols), lambda i: (0, i))]
        block_in_bytes = _round_up(r, 8) * _round_up(cols, LANES) * itemsize

    # Explicit scoped-VMEM limit: actual double-buffered footprint + headroom,
    # floored at 16 MiB and capped well under v7x's 64 MiB physical VMEM.
    vmem_limit = min(48 << 20, max(16 << 20, 4 * block_in_bytes + (4 << 20)))

    cost = pl.CostEstimate(
        flops=8 * r * n,
        transcendentals=0,
        bytes_accessed=2 * r * n * itemsize + num_tiles * 8 * LANES * 4,
    )

    partials = pl.pallas_call(
        kernel,
        out_shape=jax.ShapeDtypeStruct((num_tiles, 8, LANES), jnp.float32),
        grid=(num_tiles,),
        in_specs=in_specs,
        out_specs=pl.BlockSpec((1, 8, LANES), lambda i: (i, 0, 0)),
        compiler_params=pltpu.CompilerParams(
            dimension_semantics=("parallel",),   # no carried state between tiles
            vmem_limit_bytes=int(vmem_limit),
        ),
        cost_estimate=cost,
    )(x_in, t_in)

    # Tiny plain-JAX epilogue on the per-tile partial sums (true element counts).
    s_mse = jnp.sum(partials[:, 0, 0])
    s_lc = jnp.sum(partials[:, 1, 0])
    s_hc = jnp.sum(partials[:, 2, 0])
    mse = (s_mse / (r * n)) ** 2
    loss_lc = (s_lc / n) ** 2
    loss_hc = (s_hc / n) ** 2
    return mse + loss_hc + loss_lc


def chl_loss_ref(inputs, targets):
    """Pure-JAX reference mirroring the PyTorch forward."""
    x = inputs.astype(jnp.float32)
    t = targets.astype(jnp.float32)
    mse = jnp.mean(t - x) ** 2
    lc = jnp.minimum(x[0] - x[1], 0.0)
    hc = jnp.minimum(x[2] - x[0], 0.0)
    return mse + jnp.mean(hc) ** 2 + jnp.mean(lc) ** 2


if __name__ == "__main__":
    key = jax.random.PRNGKey(0)
    keys = jax.random.split(key, 12)

    def check(inp, tgt, tol=1e-5):
        out = jax.block_until_ready(chl_loss(inp, tgt))
        ref = chl_loss_ref(inp, tgt)
        assert jnp.allclose(out, ref, atol=tol, rtol=tol), (out, ref, inp.shape)

    # Case 1: 3 channels (LC / mid / HC) x (4,16,16): lane-dense, single tile.
    check(jax.random.normal(keys[0], (3, 4, 16, 16), dtype=jnp.float32),
          jax.random.normal(keys[1], (3, 4, 16, 16), dtype=jnp.float32))

    # Case 2: nb not a multiple of tb -> exercises the masked last tile + 2-step grid.
    check(jax.random.normal(keys[2], (3, 33, 128), dtype=jnp.float32),
          jax.random.normal(keys[3], (3, 33, 128), dtype=jnp.float32))

    # Case 3: r > 3 -> exercises the extra-row accumulation loop.
    check(jax.random.normal(keys[4], (4, 2, 16, 16), dtype=jnp.float32),
          jax.random.normal(keys[5], (4, 2, 16, 16), dtype=jnp.float32))

    # Case 4: ragged n < 128 -> 2-D fallback, single full-extent block, no pad.
    check(jax.random.normal(keys[6], (3, 5, 17), dtype=jnp.float32),
          jax.random.normal(keys[7], (3, 5, 17), dtype=jnp.float32))

    # Case 5: ragged n >= 128 (not a multiple of 128) -> 2-D fallback, masked tail.
    check(jax.random.normal(keys[8], (3, 3, 70), dtype=jnp.float32),
          jax.random.normal(keys[9], (3, 3, 70), dtype=jnp.float32))

    # Case 6: bf16 inputs -> in-kernel f32 accumulation, dtype-aware packing.
    check(jax.random.normal(keys[10], (3, 4, 8, 16), dtype=jnp.bfloat16),
          jax.random.normal(keys[11], (3, 4, 8, 16), dtype=jnp.bfloat16))

    print("KERNEL_OK")
</pallas_src>

<mosaic_0001>
module attributes {stable_mosaic.version = 11 : i64} {
  func.func @kernel(%arg0: i32, %arg1: memref<3x8x128xf32, #tpu.memory_space<vmem>>, %arg2: memref<3x8x128xf32, #tpu.memory_space<vmem>>, %arg3: memref<1x8x128xf32, #tpu.memory_space<vmem>>) attributes {dimension_semantics = [#tpu.dimension_semantics<parallel>], iteration_bounds = array<i64: 1>, scalar_prefetch = 0 : i64, scratch_operands = 0 : i64, tpu.core_type = #tpu.core_type<tc>, window_params = [{transform_indices = @transform_0, window_bounds = array<i64: 3, 8, 128>}, {transform_indices = @transform_1, window_bounds = array<i64: 3, 8, 128>}, {transform_indices = @transform_2, window_bounds = array<i64: 1, 8, 128>}]} {
    %c0 = arith.constant 0 : index
    %c0_0 = arith.constant 0 : index
    %c0_1 = arith.constant 0 : index
    %0 = vector.load %arg1[%c0, %c0_0, %c0_1] : memref<3x8x128xf32, #tpu.memory_space<vmem>>, vector<1x8x128xf32>
    %1 = vector.shape_cast %0 : vector<1x8x128xf32> to vector<8x128xf32>
    %c1 = arith.constant 1 : index
    %c0_2 = arith.constant 0 : index
    %c0_3 = arith.constant 0 : index
    %2 = vector.load %arg1[%c1, %c0_2, %c0_3] : memref<3x8x128xf32, #tpu.memory_space<vmem>>, vector<1x8x128xf32>
    %3 = vector.shape_cast %2 : vector<1x8x128xf32> to vector<8x128xf32>
    %c2 = arith.constant 2 : index
    %c0_4 = arith.constant 0 : index
    %c0_5 = arith.constant 0 : index
    %4 = vector.load %arg1[%c2, %c0_4, %c0_5] : memref<3x8x128xf32, #tpu.memory_space<vmem>>, vector<1x8x128xf32>
    %5 = vector.shape_cast %4 : vector<1x8x128xf32> to vector<8x128xf32>
    %6 = vector.shape_cast %1 : vector<8x128xf32> to vector<1x8x128xf32>
    %cst = arith.constant dense<0.000000e+00> : vector<1xf32>
    %7 = vector.multi_reduction <add>, %6, %cst [1, 2] : vector<1x8x128xf32> to vector<1xf32>
    %8 = vector.shape_cast %7 : vector<1xf32> to vector<1x1x1xf32>
    %9 = vector.extract %8[0, 0, 0] : f32 from vector<1x1x1xf32>
    %10 = vector.shape_cast %3 : vector<8x128xf32> to vector<1x8x128xf32>
    %cst_6 = arith.constant dense<0.000000e+00> : vector<1xf32>
    %11 = vector.multi_reduction <add>, %10, %cst_6 [1, 2] : vector<1x8x128xf32> to vector<1xf32>
    %12 = vector.shape_cast %11 : vector<1xf32> to vector<1x1x1xf32>
    %13 = vector.extract %12[0, 0, 0] : f32 from vector<1x1x1xf32>
    %14 = arith.addf %9, %13 : f32
    %15 = vector.shape_cast %5 : vector<8x128xf32> to vector<1x8x128xf32>
    %cst_7 = arith.constant dense<0.000000e+00> : vector<1xf32>
    %16 = vector.multi_reduction <add>, %15, %cst_7 [1, 2] : vector<1x8x128xf32> to vector<1xf32>
    %17 = vector.shape_cast %16 : vector<1xf32> to vector<1x1x1xf32>
    %18 = vector.extract %17[0, 0, 0] : f32 from vector<1x1x1xf32>
    %19 = arith.addf %14, %18 : f32
    %c0_8 = arith.constant 0 : index
    %c0_9 = arith.constant 0 : index
    %c0_10 = arith.constant 0 : index
    %20 = vector.load %arg2[%c0_8, %c0_9, %c0_10] : memref<3x8x128xf32, #tpu.memory_space<vmem>>, vector<1x8x128xf32>
    %21 = vector.shape_cast %20 : vector<1x8x128xf32> to vector<8x128xf32>
    %22 = vector.shape_cast %21 : vector<8x128xf32> to vector<1x8x128xf32>
    %cst_11 = arith.constant dense<0.000000e+00> : vector<1xf32>
    %23 = vector.multi_reduction <add>, %22, %cst_11 [1, 2] : vector<1x8x128xf32> to vector<1xf32>
    %24 = vector.shape_cast %23 : vector<1xf32> to vector<1x1x1xf32>
    %25 = vector.extract %24[0, 0, 0] : f32 from vector<1x1x1xf32>
    %c1_12 = arith.constant 1 : index
    %c0_13 = arith.constant 0 : index
    %c0_14 = arith.constant 0 : index
    %26 = vector.load %arg2[%c1_12, %c0_13, %c0_14] : memref<3x8x128xf32, #tpu.memory_space<vmem>>, vector<1x8x128xf32>
    %27 = vector.shape_cast %26 : vector<1x8x128xf32> to vector<8x128xf32>
    %28 = vector.shape_cast %27 : vector<8x128xf32> to vector<1x8x128xf32>
    %cst_15 = arith.constant dense<0.000000e+00> : vector<1xf32>
    %29 = vector.multi_reduction <add>, %28, %cst_15 [1, 2] : vector<1x8x128xf32> to vector<1xf32>
    %30 = vector.shape_cast %29 : vector<1xf32> to vector<1x1x1xf32>
    %31 = vector.extract %30[0, 0, 0] : f32 from vector<1x1x1xf32>
    %32 = arith.addf %25, %31 : f32
    %c2_16 = arith.constant 2 : index
    %c0_17 = arith.constant 0 : index
    %c0_18 = arith.constant 0 : index
    %33 = vector.load %arg2[%c2_16, %c0_17, %c0_18] : memref<3x8x128xf32, #tpu.memory_space<vmem>>, vector<1x8x128xf32>
    %34 = vector.shape_cast %33 : vector<1x8x128xf32> to vector<8x128xf32>
    %35 = vector.shape_cast %34 : vector<8x128xf32> to vector<1x8x128xf32>
    %cst_19 = arith.constant dense<0.000000e+00> : vector<1xf32>
    %36 = vector.multi_reduction <add>, %35, %cst_19 [1, 2] : vector<1x8x128xf32> to vector<1xf32>
    %37 = vector.shape_cast %36 : vector<1xf32> to vector<1x1x1xf32>
    %38 = vector.extract %37[0, 0, 0] : f32 from vector<1x1x1xf32>
    %39 = arith.addf %32, %38 : f32
    %40 = arith.subf %1, %3 : vector<8x128xf32>
    %cst_20 = arith.constant 0.000000e+00 : f32
    %41 = vector.broadcast %cst_20 : f32 to vector<8x128xf32>
    %42 = arith.minimumf %40, %41 : vector<8x128xf32>
    %43 = vector.shape_cast %42 : vector<8x128xf32> to vector<1x8x128xf32>
    %cst_21 = arith.constant dense<0.000000e+00> : vector<1xf32>
    %44 = vector.multi_reduction <add>, %43, %cst_21 [1, 2] : vector<1x8x128xf32> to vector<1xf32>
    %45 = vector.shape_cast %44 : vector<1xf32> to vector<1x1x1xf32>
    %46 = vector.extract %45[0, 0, 0] : f32 from vector<1x1x1xf32>
    %47 = arith.subf %5, %1 : vector<8x128xf32>
    %cst_22 = arith.constant 0.000000e+00 : f32
    %48 = vector.broadcast %cst_22 : f32 to vector<8x128xf32>
    %49 = arith.minimumf %47, %48 : vector<8x128xf32>
    %50 = vector.shape_cast %49 : vector<8x128xf32> to vector<1x8x128xf32>
    %cst_23 = arith.constant dense<0.000000e+00> : vector<1xf32>
    %51 = vector.multi_reduction <add>, %50, %cst_23 [1, 2] : vector<1x8x128xf32> to vector<1xf32>
    %52 = vector.shape_cast %51 : vector<1xf32> to vector<1x1x1xf32>
    %53 = vector.extract %52[0, 0, 0] : f32 from vector<1x1x1xf32>
    %54 = arith.subf %39, %19 : f32
    %55 = tpu.iota {dimensions = array<i32: 0>} : vector<8x128xi32>
    %c0_i32 = arith.constant 0 : i32
    %56 = vector.broadcast %c0_i32 : i32 to vector<8x128xi32>
    %57 = arith.cmpi eq, %55, %56 : vector<8x128xi32>
    %cst_24 = arith.constant 0.000000e+00 : f32
    %58 = vector.broadcast %54 : f32 to vector<8x128xf32>
    %59 = vector.broadcast %cst_24 : f32 to vector<8x128xf32>
    %60 = arith.select %57, %58, %59 : vector<8x128xi1>, vector<8x128xf32>
    %c1_i32 = arith.constant 1 : i32
    %61 = vector.broadcast %c1_i32 : i32 to vector<8x128xi32>
    %62 = arith.cmpi eq, %55, %61 : vector<8x128xi32>
    %cst_25 = arith.constant 0.000000e+00 : f32
    %63 = vector.broadcast %46 : f32 to vector<8x128xf32>
    %64 = vector.broadcast %cst_25 : f32 to vector<8x128xf32>
    %65 = arith.select %62, %63, %64 : vector<8x128xi1>, vector<8x128xf32>
    %66 = arith.addf %60, %65 : vector<8x128xf32>
    %c2_i32 = arith.constant 2 : i32
    %67 = vector.broadcast %c2_i32 : i32 to vector<8x128xi32>
    %68 = arith.cmpi eq, %55, %67 : vector<8x128xi32>
    %cst_26 = arith.constant 0.000000e+00 : f32
    %69 = vector.broadcast %53 : f32 to vector<8x128xf32>
    %70 = vector.broadcast %cst_26 : f32 to vector<8x128xf32>
    %71 = arith.select %68, %69, %70 : vector<8x128xi1>, vector<8x128xf32>
    %72 = arith.addf %66, %71 : vector<8x128xf32>
    %73 = vector.shape_cast %72 : vector<8x128xf32> to vector<1x8x128xf32>
    %c0_27 = arith.constant 0 : index
    %c0_28 = arith.constant 0 : index
    %c0_29 = arith.constant 0 : index
    %74 = vector.load %arg3[%c0_27, %c0_28, %c0_29] : memref<1x8x128xf32, #tpu.memory_space<vmem>>, vector<1x8x128xf32>
    tpu.vector_store %arg3[%c0_27, %c0_28, %c0_29], %73 {strides = array<i32>} : memref<1x8x128xf32, #tpu.memory_space<vmem>>, vector<1x8x128xf32>,
    return
  }
  func.func @transform_0(%arg0: i32) -> (i32, i32, i32) {
    %c0_i32 = arith.constant 0 : i32
    %c0_i32_0 = arith.constant 0 : i32
    %c0_i32_1 = arith.constant 0 : i32
    return %c0_i32, %arg0, %c0_i32_0 : i32, i32, i32
  }
  func.func @transform_1(%arg0: i32) -> (i32, i32, i32) {
    %c0_i32 = arith.constant 0 : i32
    %c0_i32_0 = arith.constant 0 : i32
    %c0_i32_1 = arith.constant 0 : i32
    return %c0_i32, %arg0, %c0_i32_0 : i32, i32, i32
  }
  func.func @transform_2(%arg0: i32) -> (i32, i32, i32) {
    %c0_i32 = arith.constant 0 : i32
    %c0_i32_0 = arith.constant 0 : i32
    %c0_i32_1 = arith.constant 0 : i32
    return %arg0, %c0_i32, %c0_i32_0 : i32, i32, i32
  }
}

</mosaic_0001>

<llo_original>
// kernel: tpu_custom_call.1
$region0: #{tpu_custom_call.1}
  #allocation0 [shape = 'u32[]', space=smem, size = 0x4, offset = 0x4, fixed_abs, tag = 'smem constant byte address 0x4 - core index']
  #allocation1 [shape = 'u32[144,128]{1,0:T(1,128)}', space=vmem, size = 0x12000, scoped, tag = 'internal scratch']
  %s0 = inlined_call_operand.hbm [shape: f32[3,8,128], index: 0, kind: input, shape index: {}]
  %s1 = inlined_call_operand.hbm [shape: f32[3,8,128], index: 1, kind: input, shape index: {}]
  %s2 = inlined_call_operand.hbm [shape: f32[1,8,128], index: 2, kind: output, shape index: {}]
  %s3 = sld [smem:[#allocation0]]
  $region26: #{tpu_custom_call.1} parent=0
    _
  %s5 = ssub.s32 1, %s3
  %s6 = scalar_select 0, %s5, %s3
  $region1: #{tpu_custom_call.1} parent=0
    #allocation2 [shape = 'u8[12288]{0}', space=vmem, size = 0x3000, scoped, tag = 'input window, operand 0, single buffered']
    #allocation3 [shape = 's32[1]{0}', space=sflag, size = 0x4, scoped, tag = 'scoped memory for tpu_custom_call.1']
    #allocation4 [shape = 's32[1]{0}', space=sflag, size = 0x4, scoped, tag = 'scoped memory for tpu_custom_call.1']
    #allocation5 [shape = 'u8[12288]{0}', space=vmem, size = 0x3000, scoped, tag = 'input window, operand 1, single buffered']
    #allocation6 [shape = 's32[1]{0}', space=sflag, size = 0x4, scoped, tag = 'scoped memory for tpu_custom_call.1']
    #allocation7 [shape = 'u8[4096]{0}', space=vmem, size = 0x1000, scoped, tag = 'output window, operand 0, single buffered']
    %7 = vsyncpa [#allocation3], 0
    %8 = vsyncpa [#allocation6], 0
    %9 = vsyncpa [#allocation4], 0
    // Predicated region
    $region2: #{tpu_custom_call.1} parent=1 // pred_check
      _
    $region3: #{tpu_custom_call.1} parent=1 // pred_check_branch
      %11 = sbr.rel (0) target = $region5
    $region4: #{tpu_custom_call.1} parent=1 // pred_region
      %s13 = ssub.s32 384, 384
      %14 = vsyncadd [#allocation3], %s13
      %s15 = sshll.u32 [#allocation2], 4
      %s16 = int_to_ptr.vmem [resolvable:$true] %s15
      %21 = dma.hbm_to_vmem [thread:$0]  %s0, 384, %s16, [#allocation3], 128, 128, 8
    $region5: #{tpu_custom_call.1} parent=1 // pred_fallthru
      _
    // Predicated region
    $region6: #{tpu_custom_call.1} parent=1 // pred_check
      _
    $region7: #{tpu_custom_call.1} parent=1 // pred_check_branch
      %23 = sbr.rel (0) target = $region9
    $region8: #{tpu_custom_call.1} parent=1 // pred_region
      %s25 = ssub.s32 384, 384
      %26 = vsyncadd [#allocation6], %s25
      %s27 = sshll.u32 [#allocation5], 4
      %s28 = int_to_ptr.vmem [resolvable:$true] %s27
      %33 = dma.hbm_to_vmem [thread:$0]  %s1, 384, %s28, [#allocation6], 128, 128, 8
    $region9: #{tpu_custom_call.1} parent=1 // pred_fallthru
      _
    // Predicated region
    $region10: #{tpu_custom_call.1} parent=1 // pred_check
      _
    $region11: #{tpu_custom_call.1} parent=1 // pred_check_branch
      %35 = sbr.rel (0) target = $region13
    $region12: #{tpu_custom_call.1} parent=1 // pred_region
      %36 = dma.done [#allocation3], 384
    $region13: #{tpu_custom_call.1} parent=1 // pred_fallthru
      _
    // Predicated region
    $region14: #{tpu_custom_call.1} parent=1 // pred_check
      _
    $region15: #{tpu_custom_call.1} parent=1 // pred_check_branch
      %38 = sbr.rel (0) target = $region17
    $region16: #{tpu_custom_call.1} parent=1 // pred_region
      %39 = dma.done [#allocation6], 384
    $region17: #{tpu_custom_call.1} parent=1 // pred_fallthru
      _
    %v40 = vld [vmem:[#allocation2] sm:$0xff]
    %s41 = scalar_lea.vmem [#allocation2], 8
    %v42 = vld [vmem:[%s41] sm:$0xff]
    %s43 = scalar_lea.vmem [#allocation2], 16
    %v44 = vld [vmem:[%s43] sm:$0xff]
    %45 = vadd.xlane.f32.xlu0 %v40
    %v46 = vpop.xlane.xlu0 %45
    %v47 = vrot.slane %v46, 4
    %v48 = vadd.f32 %v46, %v47
    %v49 = vrot.slane %v48, 2
    %v50 = vadd.f32 %v48, %v49
    %v51 = vrot.slane %v50, 1
    %v52 = vadd.f32 %v50, %v51
    %s53 = vtos %v52
    %54 = vadd.xlane.f32.xlu0 %v42
    %v55 = vpop.xlane.xlu0 %54
    %v56 = vrot.slane %v55, 4
    %v57 = vadd.f32 %v55, %v56
    %v58 = vrot.slane %v57, 2
    %v59 = vadd.f32 %v57, %v58
    %v60 = vrot.slane %v59, 1
    %v61 = vadd.f32 %v59, %v60
    %s62 = vtos %v61
    %s63 = sadd.f32 %s53, %s62
    %64 = vadd.xlane.f32.xlu0 %v44
    %v65 = vpop.xlane.xlu0 %64
    %v66 = vrot.slane %v65, 4
    %v67 = vadd.f32 %v65, %v66
    %v68 = vrot.slane %v67, 2
    %v69 = vadd.f32 %v67, %v68
    %v70 = vrot.slane %v69, 1
    %v71 = vadd.f32 %v69, %v70
    %s72 = vtos %v71
    %s73 = sadd.f32 %s63, %s72
    %v74 = vld [vmem:[#allocation5] sm:$0xff]
    %75 = vadd.xlane.f32.xlu0 %v74
    %v76 = vpop.xlane.xlu0 %75
    %v77 = vrot.slane %v76, 4
    %v78 = vadd.f32 %v76, %v77
    %v79 = vrot.slane %v78, 2
    %v80 = vadd.f32 %v78, %v79
    %v81 = vrot.slane %v80, 1
    %v82 = vadd.f32 %v80, %v81
    %s83 = vtos %v82
    %s84 = scalar_lea.vmem [#allocation5], 8
    %v85 = vld [vmem:[%s84] sm:$0xff]
    %86 = vadd.xlane.f32.xlu0 %v85
    %v87 = vpop.xlane.xlu0 %86
    %v88 = vrot.slane %v87, 4
    %v89 = vadd.f32 %v87, %v88
    %v90 = vrot.slane %v89, 2
    %v91 = vadd.f32 %v89, %v90
    %v92 = vrot.slane %v91, 1
    %v93 = vadd.f32 %v91, %v92
    %s94 = vtos %v93
    %s95 = sadd.f32 %s83, %s94
    %s96 = scalar_lea.vmem [#allocation5], 16
    %v97 = vld [vmem:[%s96] sm:$0xff]
    %98 = vadd.xlane.f32.xlu0 %v97
    %v99 = vpop.xlane.xlu0 %98
    %v100 = vrot.slane %v99, 4
    %v101 = vadd.f32 %v99, %v100
    %v102 = vrot.slane %v101, 2
    %v103 = vadd.f32 %v101, %v102
    %v104 = vrot.slane %v103, 1
    %v105 = vadd.f32 %v103, %v104
    %s106 = vtos %v105
    %s107 = sadd.f32 %s95, %s106
    %v108 = vsub.f32 %v40, %v42
    %v109 = vmin.f32 %v108, 0.0
    %110 = vadd.xlane.f32.xlu0 %v109
    %v111 = vpop.xlane.xlu0 %110
    %v112 = vrot.slane %v111, 4
    %v113 = vadd.f32 %v111, %v112
    %v114 = vrot.slane %v113, 2
    %v115 = vadd.f32 %v113, %v114
    %v116 = vrot.slane %v115, 1
    %v117 = vadd.f32 %v115, %v116
    %s118 = vtos %v117
    %v119 = vsub.f32 %v44, %v40
    %v120 = vmin.f32 %v119, 0.0
    %121 = vadd.xlane.f32.xlu0 %v120
    %v122 = vpop.xlane.xlu0 %121
    %v123 = vrot.slane %v122, 4
    %v124 = vadd.f32 %v122, %v123
    %v125 = vrot.slane %v124, 2
    %v126 = vadd.f32 %v124, %v125
    %v127 = vrot.slane %v126, 1
    %v128 = vadd.f32 %v126, %v127
    %s129 = vtos %v128
    %s130 = ssub.f32 %s107, %s73
    %v131 = vlaneseq
    %v132 = vshrl.u32 %v131, 7
    %vm133 = vcmp.eq.s32.totalorder %v132, 0
    %v134 = vstv %s130
    %v135 = vsel %vm133, %v134, 0.0
    %vm136 = vcmp.eq.s32.totalorder %v132, 1
    %v137 = vstv %s118
    %v138 = vsel %vm136, %v137, 0.0
    %v139 = vadd.f32 %v135, %v138
    %vm140 = vcmp.eq.s32.totalorder %v132, 2
    %v141 = vstv %s129
    %v142 = vsel %vm140, %v141, 0.0
    %v143 = vadd.f32 %v139, %v142
    %144 = vst [vmem:[#allocation7] sm:$0xff] %v143
    // Predicated region
    $region18: #{tpu_custom_call.1} parent=1 // pred_check
      _
    $region19: #{tpu_custom_call.1} parent=1 // pred_check_branch
      %146 = sbr.rel (0) target = $region21
    $region20: #{tpu_custom_call.1} parent=1 // pred_region
      %s148 = ssub.s32 128, 128
      %149 = vsyncadd [#allocation4], %s148
      %s151 = sshll.u32 [#allocation7], 4
      %s152 = int_to_ptr.vmem [resolvable:$true] %s151
      %154 = dma.vmem_to_hbm [thread:$0]  %s152, 128, %s2, [#allocation4]
    $region21: #{tpu_custom_call.1} parent=1 // pred_fallthru
      _
    // Predicated region
    $region22: #{tpu_custom_call.1} parent=1 // pred_check
      _
    $region23: #{tpu_custom_call.1} parent=1 // pred_check_branch
      %156 = sbr.rel (0) target = $region25
    $region24: #{tpu_custom_call.1} parent=1 // pred_region
      %157 = dma.done [#allocation4], 128
    $region25: #{tpu_custom_call.1} parent=1 // pred_fallthru
      _
    %158 = vsyncpa [#allocation3], 1
    %159 = vsyncpa [#allocation6], 1
    %160 = vsyncpa [#allocation4], 1

</llo_original>
